<compile_context>
chip_gen: v5e
topology: v5e:2x2
jax: 0.10.0
libtpu: 0.0.40
codegen_flags: <defaults>
</compile_context>

<pallas_src>
import jax
import jax.numpy as jnp
from jax.experimental import pallas as pl
from jax.experimental.pallas import tpu as pltpu

F_PAD = 128  # lane-dense feature width (all feature dims 9 / 4 / 2 pad to 128)


def _round_up(x, m):
    return (x + m - 1) // m * m


def _pad2(x, rows, cols, dtype):
    out = jnp.zeros((rows, cols), dtype)
    return out.at[: x.shape[0], : x.shape[1]].set(x.astype(dtype))


def _vmem_budget():
    """Generation-aware scoped-VMEM limit: ~3/4 of physical, capped at 96 MiB.
    -> 96 MiB on 128-MiB v5e/v6e, 48 MiB on 64-MiB v7x."""
    cap = 64 << 20  # conservative fallback (v7x-sized) if the query fails
    try:
        cap = int(pltpu.get_tpu_info().vmem_capacity_bytes)
    except Exception:
        pass
    return min(cap * 3 // 4, 96 << 20)


def _pick_tiles(n_pad, itemsize, a_budget):
    """Row tile tm and reduction tile tk for the streamed A block.

    tm: largest of (512, 256, 128) dividing n_pad while keeping >= 2 row steps
        (so the "parallel" axis can shard across v7x's 2 TensorCores and the
        input/output pipeline stays >= 2 deep).
    tk: largest multiple of 128 dividing n_pad such that the (tm, tk) A block
        fits the per-buffer budget -> VMEM use bounded for any graph size.
    """
    tm = 128
    for cand in (512, 256):
        if n_pad % cand == 0 and n_pad // cand >= 2:
            tm = cand
            break
    tk = n_pad
    while tk > 128 and (tm * tk * itemsize > a_budget or n_pad % tk != 0):
        tk -= 128
    if tm * tk * itemsize > a_budget and tm > 128:
        tm = 128
        tk = n_pad
        while tk > 128 and (tm * tk * itemsize > a_budget or n_pad % tk != 0):
            tk -= 128
    return tm, tk


# ----------------------------------------------------------------------------
# Fused kernel: both layers in one call, A resident in VMEM (small graphs).
# ----------------------------------------------------------------------------
def _fused_gcn_kernel(a_ref, d_ref, xw1_ref, w2_ref, b1_ref, b2_ref, o_ref):
    a = a_ref[...]                                   # (n_pad, n_pad) bf16, exact 0/1
    d = d_ref[...]                                   # (n_pad, 1) f32 D^{-1/2}, 0 on pad rows
    # Layer 1: H1 = tanh(d * (A @ (d * XW1)) + b1)   (column scale pre-folded into xw1)
    h1 = jnp.dot(a, xw1_ref[...], preferred_element_type=jnp.float32)
    h1 = jnp.tanh(d * h1 + b1_ref[...])
    # Fused projection: XW2 = (d * H1) @ W2.  d == 0 on padded rows, so the
    # tanh(b1) != 0 padded H1 rows can never leak into layer 2 (load-bearing).
    xw2 = jnp.dot((d * h1).astype(jnp.bfloat16), w2_ref[...],
                  preferred_element_type=jnp.float32)
    # Layer 2: H2 = d * (A @ XW2) + b2
    h2 = jnp.dot(a, xw2.astype(jnp.bfloat16), preferred_element_type=jnp.float32)
    o_ref[...] = d * h2 + b2_ref[...]


# ----------------------------------------------------------------------------
# Row x K tiled kernels (large graphs): layer 1 fuses tanh + (d*H1)@W2.
# ----------------------------------------------------------------------------
def _layer1_kernel(a_ref, xw_ref, d_ref, b_ref, w2_ref, o_ref, acc_ref):
    k = pl.program_id(1)

    @pl.when(k == 0)
    def _():
        acc_ref[...] = jnp.zeros_like(acc_ref)

    acc_ref[...] += jnp.dot(a_ref[...], xw_ref[...],
                            preferred_element_type=jnp.float32)

    @pl.when(k == pl.num_programs(1) - 1)
    def _():
        d = d_ref[...]
        h1 = jnp.tanh(d * acc_ref[...] + b_ref[...])
        xw2 = jnp.dot((d * h1).astype(jnp.bfloat16), w2_ref[...],
                      preferred_element_type=jnp.float32)
        o_ref[...] = xw2.astype(o_ref.dtype)         # bf16 XW2 straight to layer 2


def _layer2_kernel(a_ref, xw_ref, d_ref, b_ref, o_ref, acc_ref):
    k = pl.program_id(1)

    @pl.when(k == 0)
    def _():
        acc_ref[...] = jnp.zeros_like(acc_ref)

    acc_ref[...] += jnp.dot(a_ref[...], xw_ref[...],
                            preferred_element_type=jnp.float32)

    @pl.when(k == pl.num_programs(1) - 1)
    def _():
        o_ref[...] = d_ref[...] * acc_ref[...] + b_ref[...]


def _run_layer(a_pad, xw_pad, d_pad, b_pad, w2_pad, *, tm, tk, vmem_limit,
               first_layer):
    n_pad = a_pad.shape[0]
    grid = (n_pad // tm, n_pad // tk)
    in_specs = [
        pl.BlockSpec((tm, tk), lambda i, k: (i, k)),          # A row x K tile
        pl.BlockSpec((tk, F_PAD), lambda i, k: (k, 0)),       # XW K tile
        pl.BlockSpec((tm, 1), lambda i, k: (i, 0)),           # d row tile
        pl.BlockSpec((1, F_PAD), lambda i, k: (0, 0),         # bias: resident,
                     pipeline_mode=pl.Buffered(1)),           # no double buffer
    ]
    args = [a_pad, xw_pad, d_pad, b_pad]
    if first_layer:
        in_specs.append(pl.BlockSpec((F_PAD, F_PAD), lambda i, k: (0, 0),
                                     pipeline_mode=pl.Buffered(1)))
        args.append(w2_pad)
        kernel, out_dtype = _layer1_kernel, jnp.bfloat16
    else:
        kernel, out_dtype = _layer2_kernel, jnp.float32
    return pl.pallas_call(
        kernel,
        out_shape=jax.ShapeDtypeStruct((n_pad, F_PAD), out_dtype),
        grid_spec=pltpu.PrefetchScalarGridSpec(
            num_scalar_prefetch=0,
            grid=grid,
            in_specs=in_specs,
            out_specs=pl.BlockSpec((tm, F_PAD), lambda i, k: (i, 0)),
            scratch_shapes=[pltpu.VMEM((tm, F_PAD), jnp.float32)],
        ),
        compiler_params=pltpu.CompilerParams(
            dimension_semantics=("parallel", "arbitrary"),
            vmem_limit_bytes=vmem_limit,
        ),
    )(*args)


# ----------------------------------------------------------------------------
# Forward pass
# ----------------------------------------------------------------------------
def gcn_forward(x, edge_index, w1, b1, w2, b2):
    n = x.shape[0]
    f_out = w2.shape[1]
    n_pad = _round_up(n, 128)

    src = edge_index[0]
    dst = edge_index[1]

    # ---- glue: RAW adjacency (+ remaining self loops), built directly in the
    # streaming dtype at padded size; degrees straight from the edge list
    # (no f32 NxN materialize + cast).  This is one-time O(E)/O(N^2) setup.
    a_pad = jnp.zeros((n_pad, n_pad), jnp.bfloat16).at[dst, src].add(
        jnp.ones(src.shape, jnp.bfloat16))
    self_cnt = jnp.zeros((n,), jnp.float32).at[dst].add(
        jnp.where(src == dst, 1.0, 0.0))
    need_self = self_cnt == 0.0
    idx = jnp.arange(n)
    a_pad = a_pad.at[idx, idx].add(need_self.astype(jnp.bfloat16))
    deg = jnp.zeros((n,), jnp.float32).at[dst].add(1.0) + need_self.astype(jnp.float32)
    d_is = jnp.where(deg > 0, jax.lax.rsqrt(deg), 0.0)

    # Load-bearing invariants: padded rows/cols of a_pad are exactly 0 and
    # d_pad is 0 on padded rows, so padded H1 rows (tanh(b1) != 0) never leak.
    d_pad = jnp.zeros((n_pad, 1), jnp.float32).at[:n, 0].set(d_is)

    # Column normalisation folded into XW1 (rows pre-scaled by d_is); tiny matmul.
    xw1s = _pad2(d_is[:, None] * (x.astype(jnp.float32) @ w1.astype(jnp.float32)),
                 n_pad, F_PAD, jnp.bfloat16)
    w2p = _pad2(w2, F_PAD, F_PAD, jnp.bfloat16)
    b1p = _pad2(jnp.reshape(b1, (1, -1)), 1, F_PAD, jnp.float32)
    b2p = _pad2(jnp.reshape(b2, (1, -1)), 1, F_PAD, jnp.float32)

    vmem_limit = _vmem_budget()

    if n_pad * n_pad * a_pad.dtype.itemsize <= vmem_limit // 3:
        # ---- small/medium graphs: one fused call, A resident in VMEM ----------
        out = pl.pallas_call(
            _fused_gcn_kernel,
            out_shape=jax.ShapeDtypeStruct((n_pad, F_PAD), jnp.float32),
            compiler_params=pltpu.CompilerParams(vmem_limit_bytes=vmem_limit),
        )(a_pad, d_pad, xw1s, w2p, b1p, b2p)
    else:
        # ---- large graphs: two row x K tiled calls, no f32 H1 HBM round trip ---
        tm, tk = _pick_tiles(n_pad, a_pad.dtype.itemsize, vmem_limit // 4)
        xw2 = _run_layer(a_pad, xw1s, d_pad, b1p, w2p,
                         tm=tm, tk=tk, vmem_limit=vmem_limit, first_layer=True)
        out = _run_layer(a_pad, xw2, d_pad, b2p, None,
                         tm=tm, tk=tk, vmem_limit=vmem_limit, first_layer=False)

    return out[:n, :f_out]


if __name__ == "__main__":
    N = 16                      # number of graph nodes
    F_IN, HID, F_OUT = 9, 4, 2  # GCNConv(9, 4) -> tanh -> GCNConv(4, 2)

    key = jax.random.PRNGKey(0)
    k_x, k_w1, k_b1, k_w2, k_b2 = jax.random.split(key, 5)

    # node features
    x = jax.random.normal(k_x, (N, F_IN), dtype=jnp.float32)

    # simple symmetric ring graph: i <-> (i+1) mod N
    fwd_src = jnp.arange(N, dtype=jnp.int32)
    fwd_dst = (fwd_src + 1) % N
    edge_index = jnp.stack(
        [jnp.concatenate([fwd_src, fwd_dst]),
         jnp.concatenate([fwd_dst, fwd_src])], axis=0)  # [2, 2N]

    # deterministic parameter init (shapes from GCNConv(9,4) / GCNConv(4,2))
    # TODO(synk): torch.manual_seed(1234) Glorot init not reproduced bit-exactly.
    w1 = jax.random.normal(k_w1, (F_IN, HID), dtype=jnp.float32) * 0.3
    b1 = jax.random.normal(k_b1, (1, HID), dtype=jnp.float32) * 0.1
    w2 = jax.random.normal(k_w2, (HID, F_OUT), dtype=jnp.float32) * 0.3
    b2 = jax.random.normal(k_b2, (1, F_OUT), dtype=jnp.float32) * 0.1

    fwd = jax.jit(gcn_forward)
    out = jax.block_until_ready(fwd(x, edge_index, w1, b1, w2, b2))

    # ---- pure-JAX f32 reference (original module semantics) --------------------
    src, dst = edge_index[0], edge_index[1]
    a0 = jnp.zeros((N, N), jnp.float32).at[dst, src].add(1.0)
    diag = jnp.diagonal(a0)
    a0 = a0 + jnp.diag(jnp.where(diag == 0.0, 1.0, 0.0))
    deg = a0.sum(axis=1)
    d_is = jnp.where(deg > 0, jax.lax.rsqrt(deg), 0.0)
    a_hat = d_is[:, None] * a0 * d_is[None, :]
    h1_ref = jnp.tanh(a_hat @ (x @ w1) + b1)
    ref = a_hat @ (h1_ref @ w2) + b2

    assert out.shape == ref.shape, (out.shape, ref.shape)
    max_err = float(jnp.max(jnp.abs(out - ref)))
    # A is now exact 0/1; remaining deviation is only the bf16 XW / XW2 casts.
    assert jnp.allclose(out, ref, atol=2e-2, rtol=2e-2), f"mismatch, max_err={max_err}"

    print("KERNEL_OK")
</pallas_src>

<mosaic_0001>
module attributes {stable_mosaic.version = 11 : i64} {
  func.func @_fused_gcn_kernel(%arg0: memref<128x128xbf16, #tpu.memory_space<vmem>>, %arg1: memref<128x1xf32, #tpu.memory_space<vmem>>, %arg2: memref<128x128xbf16, #tpu.memory_space<vmem>>, %arg3: memref<128x128xbf16, #tpu.memory_space<vmem>>, %arg4: memref<1x128xf32, #tpu.memory_space<vmem>>, %arg5: memref<1x128xf32, #tpu.memory_space<vmem>>, %arg6: memref<128x128xf32, #tpu.memory_space<vmem>>) attributes {dimension_semantics = [], scalar_prefetch = 0 : i64, scratch_operands = 0 : i64, tpu.core_type = #tpu.core_type<tc>} {
    %c0 = arith.constant 0 : index
    %c0_0 = arith.constant 0 : index
    %0 = vector.load %arg0[%c0, %c0_0] : memref<128x128xbf16, #tpu.memory_space<vmem>>, vector<128x128xbf16>
    %c0_1 = arith.constant 0 : index
    %c0_2 = arith.constant 0 : index
    %1 = vector.load %arg1[%c0_1, %c0_2] : memref<128x1xf32, #tpu.memory_space<vmem>>, vector<128x1xf32>
    %c0_3 = arith.constant 0 : index
    %c0_4 = arith.constant 0 : index
    %2 = vector.load %arg2[%c0_3, %c0_4] : memref<128x128xbf16, #tpu.memory_space<vmem>>, vector<128x128xbf16>
    %cst = arith.constant dense<0.000000e+00> : vector<128x128xf32>
    %3 = tpu.matmul %0, %2, %cst {dimension_numbers = #tpu.dot_dimension_numbers<[1], [0], [0], [1], [0, 0, 1, 1], [], []>} : vector<128x128xbf16>, vector<128x128xbf16>, vector<128x128xf32> -> vector<128x128xf32>
    %4 = vector.broadcast %1 : vector<128x1xf32> to vector<128x128xf32>
    %5 = arith.mulf %4, %3 : vector<128x128xf32>
    %c0_5 = arith.constant 0 : index
    %c0_6 = arith.constant 0 : index
    %6 = vector.load %arg4[%c0_5, %c0_6] : memref<1x128xf32, #tpu.memory_space<vmem>>, vector<1x128xf32>
    %7 = vector.broadcast %6 : vector<1x128xf32> to vector<128x128xf32>
    %8 = arith.addf %5, %7 : vector<128x128xf32>
    %9 = math.tanh %8 : vector<128x128xf32>
    %10 = vector.broadcast %1 : vector<128x1xf32> to vector<128x128xf32>
    %11 = arith.mulf %10, %9 : vector<128x128xf32>
    %12 = arith.truncf %11 : vector<128x128xf32> to vector<128x128xbf16>
    %c0_7 = arith.constant 0 : index
    %c0_8 = arith.constant 0 : index
    %13 = vector.load %arg3[%c0_7, %c0_8] : memref<128x128xbf16, #tpu.memory_space<vmem>>, vector<128x128xbf16>
    %cst_9 = arith.constant dense<0.000000e+00> : vector<128x128xf32>
    %14 = tpu.matmul %12, %13, %cst_9 {dimension_numbers = #tpu.dot_dimension_numbers<[1], [0], [0], [1], [0, 0, 1, 1], [], []>} : vector<128x128xbf16>, vector<128x128xbf16>, vector<128x128xf32> -> vector<128x128xf32>
    %15 = arith.truncf %14 : vector<128x128xf32> to vector<128x128xbf16>
    %cst_10 = arith.constant dense<0.000000e+00> : vector<128x128xf32>
    %16 = tpu.matmul %0, %15, %cst_10 {dimension_numbers = #tpu.dot_dimension_numbers<[1], [0], [0], [1], [0, 0, 1, 1], [], []>} : vector<128x128xbf16>, vector<128x128xbf16>, vector<128x128xf32> -> vector<128x128xf32>
    %17 = vector.broadcast %1 : vector<128x1xf32> to vector<128x128xf32>
    %18 = arith.mulf %17, %16 : vector<128x128xf32>
    %c0_11 = arith.constant 0 : index
    %c0_12 = arith.constant 0 : index
    %19 = vector.load %arg5[%c0_11, %c0_12] : memref<1x128xf32, #tpu.memory_space<vmem>>, vector<1x128xf32>
    %20 = vector.broadcast %19 : vector<1x128xf32> to vector<128x128xf32>
    %21 = arith.addf %18, %20 : vector<128x128xf32>
    %c0_13 = arith.constant 0 : index
    %c0_14 = arith.constant 0 : index
    %22 = vector.load %arg6[%c0_13, %c0_14] : memref<128x128xf32, #tpu.memory_space<vmem>>, vector<128x128xf32>
    tpu.vector_store %arg6[%c0_13, %c0_14], %21 {strides = array<i32>} : memref<128x128xf32, #tpu.memory_space<vmem>>, vector<128x128xf32>,
    return
  }
}

</mosaic_0001>

<llo_original>
// kernel: gcn_forward.1
$region0: #{gcn_forward.1}
  #allocation0 [shape = 'u32[]', space=smem, size = 0x4, offset = 0x4, fixed_abs, tag = 'smem constant byte address 0x4 - core index']
  #allocation1 [shape = 'u32[72,128]{1,0:T(1,128)}', space=vmem, size = 0x9000, scoped, tag = 'internal scratch']
  %s0 = inlined_call_operand.vmem [shape: bf16[128,128], index: 0, kind: input, shape index: {}]
  %s1 = inlined_call_operand.vmem [shape: f32[128,1], index: 1, kind: input, shape index: {}]
  %s2 = inlined_call_operand.vmem [shape: bf16[128,128], index: 2, kind: input, shape index: {}]
  %s3 = inlined_call_operand.vmem [shape: bf16[128,128], index: 3, kind: input, shape index: {}]
  %s4 = inlined_call_operand.vmem [shape: f32[1,128], index: 4, kind: input, shape index: {}]
  %s5 = inlined_call_operand.vmem [shape: f32[1,128], index: 5, kind: input, shape index: {}]
  %s6 = inlined_call_operand.vmem [shape: f32[128,128], index: 6, kind: output, shape index: {}]
  %s7 = sld [smem:[#allocation0]]
  $region34: #{gcn_forward.1} parent=0
    _
  %s9 = ssub.s32 1, %s7
  %s10 = scalar_select 0, %s9, %s7
  // Predicated region
  $region2: #{gcn_forward.1} parent=0 // pred_check
    _
  $region3: #{gcn_forward.1} parent=0 // pred_check_branch
    %12 = sbr.rel (0) target = $region5
  $region4: #{gcn_forward.1} parent=0 // pred_region
    _
  $region5: #{gcn_forward.1} parent=0 // pred_fallthru
    _
  // Predicated region
  $region6: #{gcn_forward.1} parent=0 // pred_check
    _
  $region7: #{gcn_forward.1} parent=0 // pred_check_branch
    %14 = sbr.rel (0) target = $region9
  $region8: #{gcn_forward.1} parent=0 // pred_region
    _
  $region9: #{gcn_forward.1} parent=0 // pred_fallthru
    _
  // Predicated region
  $region10: #{gcn_forward.1} parent=0 // pred_check
    _
  $region11: #{gcn_forward.1} parent=0 // pred_check_branch
    %16 = sbr.rel (0) target = $region13
  $region12: #{gcn_forward.1} parent=0 // pred_region
    _
  $region13: #{gcn_forward.1} parent=0 // pred_fallthru
    _
  // Predicated region
  $region14: #{gcn_forward.1} parent=0 // pred_check
    _
  $region15: #{gcn_forward.1} parent=0 // pred_check_branch
    %18 = sbr.rel (0) target = $region17
  $region16: #{gcn_forward.1} parent=0 // pred_region
    _
  $region17: #{gcn_forward.1} parent=0 // pred_fallthru
    _
  // Predicated region
  $region18: #{gcn_forward.1} parent=0 // pred_check
    _
  $region19: #{gcn_forward.1} parent=0 // pred_check_branch
    %20 = sbr.rel (0) target = $region21
  $region20: #{gcn_forward.1} parent=0 // pred_region
    _
  $region21: #{gcn_forward.1} parent=0 // pred_fallthru
    _
  // Predicated region
  $region22: #{gcn_forward.1} parent=0 // pred_check
    _
  $region23: #{gcn_forward.1} parent=0 // pred_check_branch
    %22 = sbr.rel (0) target = $region25
  $region24: #{gcn_forward.1} parent=0 // pred_region
    _
  $region25: #{gcn_forward.1} parent=0 // pred_fallthru
    _
  %v23 = vld [vmem:[%s0] sm:$0xf]
  %v24 = vld [vmem:[%s0 + $0x4] sm:$0xf]
  %v25 = vld [vmem:[%s0 + $0x8] sm:$0xf]
  %v26 = vld [vmem:[%s0 + $0xc] sm:$0xf]
  %v27 = vld [vmem:[%s0 + $0x10] sm:$0xf]
  %v28 = vld [vmem:[%s0 + $0x14] sm:$0xf]
  %v29 = vld [vmem:[%s0 + $0x18] sm:$0xf]
  %v30 = vld [vmem:[%s0 + $0x1c] sm:$0xf]
  %v31 = vld [vmem:[%s0 + $0x20] sm:$0xf]
  %v32 = vld [vmem:[%s0 + $0x24] sm:$0xf]
  %v33 = vld [vmem:[%s0 + $0x28] sm:$0xf]
  %v34 = vld [vmem:[%s0 + $0x2c] sm:$0xf]
  %v35 = vld [vmem:[%s0 + $0x30] sm:$0xf]
  %v36 = vld [vmem:[%s0 + $0x34] sm:$0xf]
  %v37 = vld [vmem:[%s0 + $0x38] sm:$0xf]
  %v38 = vld [vmem:[%s0 + $0x3c] sm:$0xf]
  %v39 = vld [vmem:[%s1] sm:$0xff]
  %v40 = vld [vmem:[%s1 + $0x8] sm:$0xff]
  %v41 = vld [vmem:[%s1 + $0x10] sm:$0xff]
  %v42 = vld [vmem:[%s1 + $0x18] sm:$0xff]
  %v43 = vld [vmem:[%s1 + $0x20] sm:$0xff]
  %v44 = vld [vmem:[%s1 + $0x28] sm:$0xff]
  %v45 = vld [vmem:[%s1 + $0x30] sm:$0xff]
  %v46 = vld [vmem:[%s1 + $0x38] sm:$0xff]
  %v47 = vld [vmem:[%s1 + $0x40] sm:$0xff]
  %v48 = vld [vmem:[%s1 + $0x48] sm:$0xff]
  %v49 = vld [vmem:[%s1 + $0x50] sm:$0xff]
  %v50 = vld [vmem:[%s1 + $0x58] sm:$0xff]
  %v51 = vld [vmem:[%s1 + $0x60] sm:$0xff]
  %v52 = vld [vmem:[%s1 + $0x68] sm:$0xff]
  %v53 = vld [vmem:[%s1 + $0x70] sm:$0xff]
  %v54 = vld [vmem:[%s1 + $0x78] sm:$0xff]
  %v55 = vld [vmem:[%s2] sm:$0xf]
  %v56 = vld [vmem:[%s2 + $0x4] sm:$0xf]
  %v57 = vld [vmem:[%s2 + $0x8] sm:$0xf]
  %v58 = vld [vmem:[%s2 + $0xc] sm:$0xf]
  %v59 = vld [vmem:[%s2 + $0x10] sm:$0xf]
  %v60 = vld [vmem:[%s2 + $0x14] sm:$0xf]
  %v61 = vld [vmem:[%s2 + $0x18] sm:$0xf]
  %v62 = vld [vmem:[%s2 + $0x1c] sm:$0xf]
  %v63 = vld [vmem:[%s2 + $0x20] sm:$0xf]
  %v64 = vld [vmem:[%s2 + $0x24] sm:$0xf]
  %v65 = vld [vmem:[%s2 + $0x28] sm:$0xf]
  %v66 = vld [vmem:[%s2 + $0x2c] sm:$0xf]
  %v67 = vld [vmem:[%s2 + $0x30] sm:$0xf]
  %v68 = vld [vmem:[%s2 + $0x34] sm:$0xf]
  %v69 = vld [vmem:[%s2 + $0x38] sm:$0xf]
  %v70 = vld [vmem:[%s2 + $0x3c] sm:$0xf]
  %v87 = vunpack.c.l.b16 %v23
  %v88 = vunpack.c.l.b16 %v24
  %v89 = vunpack.c.l.b16 %v25
  %v90 = vunpack.c.l.b16 %v26
  %v91 = vunpack.c.l.b16 %v27
  %v92 = vunpack.c.l.b16 %v28
  %v93 = vunpack.c.l.b16 %v29
  %v94 = vunpack.c.l.b16 %v30
  %v95 = vunpack.c.l.b16 %v31
  %v96 = vunpack.c.l.b16 %v32
  %v97 = vunpack.c.l.b16 %v33
  %v98 = vunpack.c.l.b16 %v34
  %v99 = vunpack.c.l.b16 %v35
  %v100 = vunpack.c.l.b16 %v36
  %v101 = vunpack.c.l.b16 %v37
  %v102 = vunpack.c.l.b16 %v38
  %v103 = vpack.c.b16 %v88, %v87
  %v104 = vpack.c.b16 %v90, %v89
  %v105 = vpack.c.b16 %v92, %v91
  %v106 = vpack.c.b16 %v94, %v93
  %v107 = vpack.c.b16 %v96, %v95
  %v108 = vpack.c.b16 %v98, %v97
  %v109 = vpack.c.b16 %v100, %v99
  %v110 = vpack.c.b16 %v102, %v101
  %v135 = vunpack.c.l.b16 %v55
  %v136 = vunpack.c.l.b16 %v56
  %v137 = vunpack.c.l.b16 %v57
  %v138 = vunpack.c.l.b16 %v58
  %v139 = vunpack.c.l.b16 %v59
  %v140 = vunpack.c.l.b16 %v60
  %v141 = vunpack.c.l.b16 %v61
  %v142 = vunpack.c.l.b16 %v62
  %v143 = vunpack.c.l.b16 %v63
  %v144 = vunpack.c.l.b16 %v64
  %v145 = vunpack.c.l.b16 %v65
  %v146 = vunpack.c.l.b16 %v66
  %v147 = vunpack.c.l.b16 %v67
  %v148 = vunpack.c.l.b16 %v68
  %v149 = vunpack.c.l.b16 %v69
  %v150 = vunpack.c.l.b16 %v70
  %v151 = vpack.c.b16 %v136, %v135
  %v152 = vpack.c.b16 %v138, %v137
  %v153 = vpack.c.b16 %v140, %v139
  %v154 = vpack.c.b16 %v142, %v141
  %v155 = vpack.c.b16 %v144, %v143
  %v156 = vpack.c.b16 %v146, %v145
  %v157 = vpack.c.b16 %v148, %v147
  %v158 = vpack.c.b16 %v150, %v149
  %167 = vmatpush.bf16.msra.mxu0 %v158
  %168 = vmatpush.bf16.msra.mxu0 %v157
  %169 = vmatpush.bf16.msra.mxu0 %v156
  %170 = vmatpush.bf16.msra.mxu0 %v155
  %171 = vmatpush.bf16.msra.mxu0 %v154
  %172 = vmatpush.bf16.msra.mxu0 %v153
  %173 = vmatpush.bf16.msra.mxu0 %v152
  %174 = vmatpush.bf16.msra.mxu0 %v151
  %175 = vmatmul.bf16.gmra.mxu0 %v103
  %v176 = vpop.f32.mrf.mxu0
  %v177 = vadd.f32 0.0, %v176
  %v178 = vpop.f32.mrf.mxu0
  %v179 = vadd.f32 0.0, %v178
  %180 = vmatmul.bf16.gmra.mxu0 %v104
  %v181 = vpop.f32.mrf.mxu0
  %v182 = vadd.f32 0.0, %v181
  %v183 = vpop.f32.mrf.mxu0
  %v184 = vadd.f32 0.0, %v183
  %185 = vmatmul.bf16.gmra.mxu0 %v105
  %v186 = vpop.f32.mrf.mxu0
  %v187 = vadd.f32 0.0, %v186
  %v188 = vpop.f32.mrf.mxu0
  %v189 = vadd.f32 0.0, %v188
  %190 = vmatmul.bf16.gmra.mxu0 %v106
  %v191 = vpop.f32.mrf.mxu0
  %v192 = vadd.f32 0.0, %v191
  %v193 = vpop.f32.mrf.mxu0
  %v194 = vadd.f32 0.0, %v193
  %195 = vmatmul.bf16.gmra.mxu0 %v107
  %v196 = vpop.f32.mrf.mxu0
  %v197 = vadd.f32 0.0, %v196
  %v198 = vpop.f32.mrf.mxu0
  %v199 = vadd.f32 0.0, %v198
  %200 = vmatmul.bf16.gmra.mxu0 %v108
  %v201 = vpop.f32.mrf.mxu0
  %v202 = vadd.f32 0.0, %v201
  %v203 = vpop.f32.mrf.mxu0
  %v204 = vadd.f32 0.0, %v203
  %205 = vmatmul.bf16.gmra.mxu0 %v109
  %v206 = vpop.f32.mrf.mxu0
  %v207 = vadd.f32 0.0, %v206
  %v208 = vpop.f32.mrf.mxu0
  %v209 = vadd.f32 0.0, %v208
  %210 = vmatmul.bf16.gmra.mxu0 %v110
  %v211 = vpop.f32.mrf.mxu0
  %v212 = vadd.f32 0.0, %v211
  %v213 = vpop.f32.mrf.mxu0
  %v214 = vadd.f32 0.0, %v213
  %215 = vdwg.mxu0
  %217 = vset.pattern.permute.xlu0 0
  %218 = vperm.xlu0 %217, %v39
  %v219 = vpop.permute.xlu0 %218
  %222 = vset.pattern.permute.xlu0 0
  %223 = vperm.xlu0 %222, %v40
  %v224 = vpop.permute.xlu0 %223
  %227 = vset.pattern.permute.xlu0 0
  %228 = vperm.xlu0 %227, %v41
  %v229 = vpop.permute.xlu0 %228
  %232 = vset.pattern.permute.xlu0 0
  %233 = vperm.xlu0 %232, %v42
  %v234 = vpop.permute.xlu0 %233
  %237 = vset.pattern.permute.xlu0 0
  %238 = vperm.xlu0 %237, %v43
  %v239 = vpop.permute.xlu0 %238
  %242 = vset.pattern.permute.xlu0 0
  %243 = vperm.xlu0 %242, %v44
  %v244 = vpop.permute.xlu0 %243
  %247 = vset.pattern.permute.xlu0 0
  %248 = vperm.xlu0 %247, %v45
  %v249 = vpop.permute.xlu0 %248
  %252 = vset.pattern.permute.xlu0 0
  %253 = vperm.xlu0 %252, %v46
  %v254 = vpop.permute.xlu0 %253
  %257 = vset.pattern.permute.xlu0 0
  %258 = vperm.xlu0 %257, %v47
  %v259 = vpop.permute.xlu0 %258
  %262 = vset.pattern.permute.xlu0 0
  %263 = vperm.xlu0 %262, %v48
  %v264 = vpop.permute.xlu0 %263
  %267 = vset.pattern.permute.xlu0 0
  %268 = vperm.xlu0 %267, %v49
  %v269 = vpop.permute.xlu0 %268
  %272 = vset.pattern.permute.xlu0 0
  %273 = vperm.xlu0 %272, %v50
  %v274 = vpop.permute.xlu0 %273
  %277 = vset.pattern.permute.xlu0 0
  %278 = vperm.xlu0 %277, %v51
  %v279 = vpop.permute.xlu0 %278
  %282 = vset.pattern.permute.xlu0 0
  %283 = vperm.xlu0 %282, %v52
  %v284 = vpop.permute.xlu0 %283
  %287 = vset.pattern.permute.xlu0 0
  %288 = vperm.xlu0 %287, %v53
  %v289 = vpop.permute.xlu0 %288
  %292 = vset.pattern.permute.xlu0 0
  %293 = vperm.xlu0 %292, %v54
  %v294 = vpop.permute.xlu0 %293
  %v296 = vmul.f32 %v219, %v177
  %v297 = vmul.f32 %v224, %v179
  %v298 = vmul.f32 %v229, %v182
  %v299 = vmul.f32 %v234, %v184
  %v300 = vmul.f32 %v239, %v187
  %v301 = vmul.f32 %v244, %v189
  %v302 = vmul.f32 %v249, %v192
  %v303 = vmul.f32 %v254, %v194
  %v304 = vmul.f32 %v259, %v197
  %v305 = vmul.f32 %v264, %v199
  %v306 = vmul.f32 %v269, %v202
  %v307 = vmul.f32 %v274, %v204
  %v308 = vmul.f32 %v279, %v207
  %v309 = vmul.f32 %v284, %v209
  %v310 = vmul.f32 %v289, %v212
  %v311 = vmul.f32 %v294, %v214
  %v312 = vld [vmem:[%s4] sm:$0x1]
  %v314 = vperm.slane %v312, 0
  %v316 = vadd.f32 %v296, %v314
  %v317 = vadd.f32 %v297, %v314
  %v318 = vadd.f32 %v298, %v314
  %v319 = vadd.f32 %v299, %v314
  %v320 = vadd.f32 %v300, %v314
  %v321 = vadd.f32 %v301, %v314
  %v322 = vadd.f32 %v302, %v314
  %v323 = vadd.f32 %v303, %v314
  %v324 = vadd.f32 %v304, %v314
  %v325 = vadd.f32 %v305, %v314
  %v326 = vadd.f32 %v306, %v314
  %v327 = vadd.f32 %v307, %v314
  %v328 = vadd.f32 %v308, %v314
  %v329 = vadd.f32 %v309, %v314
  %v330 = vadd.f32 %v310, %v314
  %v331 = vadd.f32 %v311, %v314
  %v332 = vtanh.pop %v316
  %v333 = vtanh.pop %v317
  %v334 = vtanh.pop %v318
  %v335 = vtanh.pop %v319
  %v336 = vtanh.pop %v320
  %v337 = vtanh.pop %v321
  %v338 = vtanh.pop %v322
  %v339 = vtanh.pop %v323
  %v340 = vtanh.pop %v324
  %v341 = vtanh.pop %v325
  %v342 = vtanh.pop %v326
  %v343 = vtanh.pop %v327
  %v344 = vtanh.pop %v328
  %v345 = vtanh.pop %v329
  %v346 = vtanh.pop %v330
  %v347 = vtanh.pop %v331
  %v348 = vmul.f32 %v219, %v332
  %v349 = vmul.f32 %v224, %v333
  %v350 = vmul.f32 %v229, %v334
  %v351 = vmul.f32 %v234, %v335
  %v352 = vmul.f32 %v239, %v336
  %v353 = vmul.f32 %v244, %v337
  %v354 = vmul.f32 %v249, %v338
  %v355 = vmul.f32 %v254, %v339
  %v356 = vmul.f32 %v259, %v340
  %v357 = vmul.f32 %v264, %v341
  %v358 = vmul.f32 %v269, %v342
  %v359 = vmul.f32 %v274, %v343
  %v360 = vmul.f32 %v279, %v344
  %v361 = vmul.f32 %v284, %v345
  %v362 = vmul.f32 %v289, %v346
  %v363 = vmul.f32 %v294, %v347
  %v364 = vpack.c.bf16 %v349, %v348
  %v365 = vpack.c.bf16 %v351, %v350
  %v366 = vpack.c.bf16 %v353, %v352
  %v367 = vpack.c.bf16 %v355, %v354
  %v368 = vpack.c.bf16 %v357, %v356
  %v369 = vpack.c.bf16 %v359, %v358
  %v370 = vpack.c.bf16 %v361, %v360
  %v371 = vpack.c.bf16 %v363, %v362
  %v372 = vld [vmem:[%s3] sm:$0xf]
  %v373 = vld [vmem:[%s3 + $0x4] sm:$0xf]
  %v374 = vld [vmem:[%s3 + $0x8] sm:$0xf]
  %v375 = vld [vmem:[%s3 + $0xc] sm:$0xf]
  %v376 = vld [vmem:[%s3 + $0x10] sm:$0xf]
  %v377 = vld [vmem:[%s3 + $0x14] sm:$0xf]
  %v378 = vld [vmem:[%s3 + $0x18] sm:$0xf]
  %v379 = vld [vmem:[%s3 + $0x1c] sm:$0xf]
  %v380 = vld [vmem:[%s3 + $0x20] sm:$0xf]
  %v381 = vld [vmem:[%s3 + $0x24] sm:$0xf]
  %v382 = vld [vmem:[%s3 + $0x28] sm:$0xf]
  %v383 = vld [vmem:[%s3 + $0x2c] sm:$0xf]
  %v384 = vld [vmem:[%s3 + $0x30] sm:$0xf]
  %v385 = vld [vmem:[%s3 + $0x34] sm:$0xf]
  %v386 = vld [vmem:[%s3 + $0x38] sm:$0xf]
  %v387 = vld [vmem:[%s3 + $0x3c] sm:$0xf]
  %v404 = vunpack.c.l.b16 %v372
  %v405 = vunpack.c.l.b16 %v373
  %v406 = vunpack.c.l.b16 %v374
  %v407 = vunpack.c.l.b16 %v375
  %v408 = vunpack.c.l.b16 %v376
  %v409 = vunpack.c.l.b16 %v377
  %v410 = vunpack.c.l.b16 %v378
  %v411 = vunpack.c.l.b16 %v379
  %v412 = vunpack.c.l.b16 %v380
  %v413 = vunpack.c.l.b16 %v381
  %v414 = vunpack.c.l.b16 %v382
  %v415 = vunpack.c.l.b16 %v383
  %v416 = vunpack.c.l.b16 %v384
  %v417 = vunpack.c.l.b16 %v385
  %v418 = vunpack.c.l.b16 %v386
  %v419 = vunpack.c.l.b16 %v387
  %v420 = vpack.c.b16 %v405, %v404
  %v421 = vpack.c.b16 %v407, %v406
  %v422 = vpack.c.b16 %v409, %v408
  %v423 = vpack.c.b16 %v411, %v410
  %v424 = vpack.c.b16 %v413, %v412
  %v425 = vpack.c.b16 %v415, %v414
  %v426 = vpack.c.b16 %v417, %v416
  %v427 = vpack.c.b16 %v419, %v418
  %436 = vmatpush.bf16.msra.mxu0 %v427
  %437 = vmatpush.bf16.msra.mxu0 %v426
  %438 = vmatpush.bf16.msra.mxu0 %v425
  %439 = vmatpush.bf16.msra.mxu0 %v424
  %440 = vmatpush.bf16.msra.mxu0 %v423
  %441 = vmatpush.bf16.msra.mxu0 %v422
  %442 = vmatpush.bf16.msra.mxu0 %v421
  %443 = vmatpush.bf16.msra.mxu0 %v420
  %444 = vmatmul.bf16.gmra.mxu0 %v364
  %v445 = vpop.f32.mrf.mxu0
  %v446 = vadd.f32 0.0, %v445
  %v447 = vpop.f32.mrf.mxu0
  %v448 = vadd.f32 0.0, %v447
  %449 = vmatmul.bf16.gmra.mxu0 %v365
  %v450 = vpop.f32.mrf.mxu0
  %v451 = vadd.f32 0.0, %v450
  %v452 = vpop.f32.mrf.mxu0
  %v453 = vadd.f32 0.0, %v452
  %454 = vmatmul.bf16.gmra.mxu0 %v366
  %v455 = vpop.f32.mrf.mxu0
  %v456 = vadd.f32 0.0, %v455
  %v457 = vpop.f32.mrf.mxu0
  %v458 = vadd.f32 0.0, %v457
  %459 = vmatmul.bf16.gmra.mxu0 %v367
  %v460 = vpop.f32.mrf.mxu0
  %v461 = vadd.f32 0.0, %v460
  %v462 = vpop.f32.mrf.mxu0
  %v463 = vadd.f32 0.0, %v462
  %464 = vmatmul.bf16.gmra.mxu0 %v368
  %v465 = vpop.f32.mrf.mxu0
  %v466 = vadd.f32 0.0, %v465
  %v467 = vpop.f32.mrf.mxu0
  %v468 = vadd.f32 0.0, %v467
  %469 = vmatmul.bf16.gmra.mxu0 %v369
  %v470 = vpop.f32.mrf.mxu0
  %v471 = vadd.f32 0.0, %v470
  %v472 = vpop.f32.mrf.mxu0
  %v473 = vadd.f32 0.0, %v472
  %474 = vmatmul.bf16.gmra.mxu0 %v370
  %v475 = vpop.f32.mrf.mxu0
  %v476 = vadd.f32 0.0, %v475
  %v477 = vpop.f32.mrf.mxu0
  %v478 = vadd.f32 0.0, %v477
  %479 = vmatmul.bf16.gmra.mxu0 %v371
  %v480 = vpop.f32.mrf.mxu0
  %v481 = vadd.f32 0.0, %v480
  %v482 = vpop.f32.mrf.mxu0
  %v483 = vadd.f32 0.0, %v482
  %484 = vdwg.mxu0
  %v485 = vpack.c.bf16 %v448, %v446
  %v486 = vpack.c.bf16 %v453, %v451
  %v487 = vpack.c.bf16 %v458, %v456
  %v488 = vpack.c.bf16 %v463, %v461
  %v489 = vpack.c.bf16 %v468, %v466
  %v490 = vpack.c.bf16 %v473, %v471
  %v491 = vpack.c.bf16 %v478, %v476
  %v492 = vpack.c.bf16 %v483, %v481
  %493 = vmatpush.bf16.msra.mxu0 %v492
  %494 = vmatpush.bf16.msra.mxu0 %v491
  %495 = vmatpush.bf16.msra.mxu0 %v490
  %496 = vmatpush.bf16.msra.mxu0 %v489
  %497 = vmatpush.bf16.msra.mxu0 %v488
  %498 = vmatpush.bf16.msra.mxu0 %v487
  %499 = vmatpush.bf16.msra.mxu0 %v486
  %500 = vmatpush.bf16.msra.mxu0 %v485
  %501 = vmatmul.bf16.gmra.mxu0 %v103
  %v502 = vpop.f32.mrf.mxu0
  %v503 = vadd.f32 0.0, %v502
  %v504 = vpop.f32.mrf.mxu0
  %v505 = vadd.f32 0.0, %v504
  %506 = vmatmul.bf16.gmra.mxu0 %v104
  %v507 = vpop.f32.mrf.mxu0
  %v508 = vadd.f32 0.0, %v507
  %v509 = vpop.f32.mrf.mxu0
  %v510 = vadd.f32 0.0, %v509
  %511 = vmatmul.bf16.gmra.mxu0 %v105
  %v512 = vpop.f32.mrf.mxu0
  %v513 = vadd.f32 0.0, %v512
  %v514 = vpop.f32.mrf.mxu0
  %v515 = vadd.f32 0.0, %v514
  %516 = vmatmul.bf16.gmra.mxu0 %v106
  %v517 = vpop.f32.mrf.mxu0
  %v518 = vadd.f32 0.0, %v517
  %v519 = vpop.f32.mrf.mxu0
  %v520 = vadd.f32 0.0, %v519
  %521 = vmatmul.bf16.gmra.mxu0 %v107
  %v522 = vpop.f32.mrf.mxu0
  %v523 = vadd.f32 0.0, %v522
  %v524 = vpop.f32.mrf.mxu0
  %v525 = vadd.f32 0.0, %v524
  %526 = vmatmul.bf16.gmra.mxu0 %v108
  %v527 = vpop.f32.mrf.mxu0
  %v528 = vadd.f32 0.0, %v527
  %v529 = vpop.f32.mrf.mxu0
  %v530 = vadd.f32 0.0, %v529
  %531 = vmatmul.bf16.gmra.mxu0 %v109
  %v532 = vpop.f32.mrf.mxu0
  %v533 = vadd.f32 0.0, %v532
  %v534 = vpop.f32.mrf.mxu0
  %v535 = vadd.f32 0.0, %v534
  %536 = vmatmul.bf16.gmra.mxu0 %v110
  %v537 = vpop.f32.mrf.mxu0
  %v538 = vadd.f32 0.0, %v537
  %v539 = vpop.f32.mrf.mxu0
  %v540 = vadd.f32 0.0, %v539
  %541 = vdwg.mxu0
  %v542 = vmul.f32 %v219, %v503
  %v543 = vmul.f32 %v224, %v505
  %v544 = vmul.f32 %v229, %v508
  %v545 = vmul.f32 %v234, %v510
  %v546 = vmul.f32 %v239, %v513
  %v547 = vmul.f32 %v244, %v515
  %v548 = vmul.f32 %v249, %v518
  %v549 = vmul.f32 %v254, %v520
  %v550 = vmul.f32 %v259, %v523
  %v551 = vmul.f32 %v264, %v525
  %v552 = vmul.f32 %v269, %v528
  %v553 = vmul.f32 %v274, %v530
  %v554 = vmul.f32 %v279, %v533
  %v555 = vmul.f32 %v284, %v535
  %v556 = vmul.f32 %v289, %v538
  %v557 = vmul.f32 %v294, %v540
  %v558 = vld [vmem:[%s5] sm:$0x1]
  %v560 = vperm.slane %v558, 0
  %v562 = vadd.f32 %v542, %v560
  %v563 = vadd.f32 %v543, %v560
  %v564 = vadd.f32 %v544, %v560
  %v565 = vadd.f32 %v545, %v560
  %v566 = vadd.f32 %v546, %v560
  %v567 = vadd.f32 %v547, %v560
  %v568 = vadd.f32 %v548, %v560
  %v569 = vadd.f32 %v549, %v560
  %v570 = vadd.f32 %v550, %v560
  %v571 = vadd.f32 %v551, %v560
  %v572 = vadd.f32 %v552, %v560
  %v573 = vadd.f32 %v553, %v560
  %v574 = vadd.f32 %v554, %v560
  %v575 = vadd.f32 %v555, %v560
  %v576 = vadd.f32 %v556, %v560
  %v577 = vadd.f32 %v557, %v560
  %578 = vst [vmem:[%s6] sm:$0xff] %v562
  %579 = vst [vmem:[%s6 + $0x8] sm:$0xff] %v563
  %580 = vst [vmem:[%s6 + $0x10] sm:$0xff] %v564
  %581 = vst [vmem:[%s6 + $0x18] sm:$0xff] %v565
  %582 = vst [vmem:[%s6 + $0x20] sm:$0xff] %v566
  %583 = vst [vmem:[%s6 + $0x28] sm:$0xff] %v567
  %584 = vst [vmem:[%s6 + $0x30] sm:$0xff] %v568
  %585 = vst [vmem:[%s6 + $0x38] sm:$0xff] %v569
  %586 = vst [vmem:[%s6 + $0x40] sm:$0xff] %v570
  %587 = vst [vmem:[%s6 + $0x48] sm:$0xff] %v571
  %588 = vst [vmem:[%s6 + $0x50] sm:$0xff] %v572
  %589 = vst [vmem:[%s6 + $0x58] sm:$0xff] %v573
  %590 = vst [vmem:[%s6 + $0x60] sm:$0xff] %v574
  %591 = vst [vmem:[%s6 + $0x68] sm:$0xff] %v575
  %592 = vst [vmem:[%s6 + $0x70] sm:$0xff] %v576
  %593 = vst [vmem:[%s6 + $0x78] sm:$0xff] %v577
  // Predicated region
  $region26: #{gcn_forward.1} parent=0 // pred_check
    _
  $region27: #{gcn_forward.1} parent=0 // pred_check_branch
    %595 = sbr.rel (0) target = $region29
  $region28: #{gcn_forward.1} parent=0 // pred_region
    _
  $region29: #{gcn_forward.1} parent=0 // pred_fallthru
    _
  // Predicated region
  $region30: #{gcn_forward.1} parent=0 // pred_check
    _
  $region31: #{gcn_forward.1} parent=0 // pred_check_branch
    %597 = sbr.rel (0) target = $region33
  $region32: #{gcn_forward.1} parent=0 // pred_region
    _
  $region33: #{gcn_forward.1} parent=0 // pred_fallthru
    _

</llo_original>
